<compile_context>
chip_gen: v7x
topology: tpu7x:2x2x1
jax: 0.10.0
libtpu: 0.0.40
codegen_flags: <defaults>
</compile_context>

<pallas_src>
import math

import jax
import jax.numpy as jnp
from jax.experimental import pallas as pl
from jax.experimental.pallas import tpu as pltpu


def _round_up(n, m):
    return (n + m - 1) // m * m


def _cdiv(a, b):
    return -(-a // b)


def _mlp_kernel(x_ref, w1_ref, b1_ref, w2_ref, b2_ref, o_ref):
    # x arrives as f32 (no wrapper cast pass); cast to bf16 in VMEM for the MXU.
    x = x_ref[...].astype(jnp.bfloat16)
    # lin1: (bm, 237)bf16 @ (237, 512)bf16 -> f32 accumulation on the MXU.
    h = jnp.dot(x, w1_ref[...], preferred_element_type=jnp.float32)
    h = h + b1_ref[...]                       # f32 bias
    h = jnp.maximum(h, 0.2 * h)               # leaky_relu(0.2): single VALU max
    # lin2: cast activations to bf16 so the second matmul also hits the bf16 MXU path.
    out = jnp.dot(h.astype(jnp.bfloat16), w2_ref[...],
                  preferred_element_type=jnp.float32)
    o_ref[...] = (out + b2_ref[...]).astype(o_ref.dtype)


def _choose_tiles(B):
    """Adaptive batch tiling.

    - B <= 16: a single block (splitting < 16 rows across cores is pointless).
    - otherwise: at least 2 blocks so the "parallel" axis uses both v7x TCs,
      with tiles capped at 1024 rows; bm = round_up(cdiv(B, nblk), 8) keeps
      batch-padding waste below 8 rows.
    """
    BM_MAX = 1024
    if B <= 16:
        nblk = 1
    else:
        nblk = max(2, _cdiv(B, BM_MAX))
    bm = _round_up(_cdiv(B, nblk), 8)
    return bm, nblk


@jax.jit
def mlp_forward(x, w1, b1, w2, b2):
    """x: (B, input_dim) f32. w1/w2: bf16 (in, out) layout. Returns (B, out_dim) f32."""
    B, in_dim = x.shape
    in_dim_w, hid = w1.shape
    hid2, out_dim = w2.shape
    assert in_dim == in_dim_w and hid == hid2
    assert b1.shape == (1, hid) and b2.shape == (1, out_dim)

    bm, nblk = _choose_tiles(B)
    Bp = bm * nblk
    # Only pad batch rows when B does not tile exactly (adaptive bm keeps this < 8 rows).
    x_in = x if Bp == B else jnp.pad(x, ((0, Bp - B), (0, 0)))

    out = pl.pallas_call(
        _mlp_kernel,
        out_shape=jax.ShapeDtypeStruct((Bp, out_dim), jnp.float32),
        grid=(nblk,),
        in_specs=[
            pl.BlockSpec((bm, in_dim), lambda i: (i, 0)),    # x tile, streamed, f32
            pl.BlockSpec((in_dim, hid), lambda i: (0, 0)),   # w1, resident, bf16
            pl.BlockSpec((1, hid), lambda i: (0, 0)),        # b1, resident, f32
            pl.BlockSpec((hid, out_dim), lambda i: (0, 0)),  # w2, resident, bf16
            pl.BlockSpec((1, out_dim), lambda i: (0, 0)),    # b2, resident, f32
        ],
        out_specs=pl.BlockSpec((bm, out_dim), lambda i: (i, 0)),
        compiler_params=pltpu.CompilerParams(
            dimension_semantics=("parallel",),
        ),
    )(x_in, w1, b1, w2, b2)

    return out if Bp == B else out[:B]


def init_params(key, input_dim, inte_dim, out_dim):
    """torch.nn.Linear-style U(-1/sqrt(fan_in), +) init, stored (in, out).

    Returns kernel params (bf16 weights, f32 biases) and pure-f32 params for the
    semantic reference.
    """
    k1, k2, k3, k4 = jax.random.split(key, 4)
    bound1 = 1.0 / math.sqrt(input_dim)
    bound2 = 1.0 / math.sqrt(inte_dim)
    w1 = jax.random.uniform(k1, (input_dim, inte_dim), jnp.float32, -bound1, bound1)
    b1 = jax.random.uniform(k2, (1, inte_dim), jnp.float32, -bound1, bound1)
    w2 = jax.random.uniform(k3, (inte_dim, out_dim), jnp.float32, -bound2, bound2)
    b2 = jax.random.uniform(k4, (1, out_dim), jnp.float32, -bound2, bound2)

    kernel_params = (w1.astype(jnp.bfloat16), b1, w2.astype(jnp.bfloat16), b2)
    f32_params = (w1, b1, w2, b2)
    return kernel_params, f32_params


def reference_forward_f32(x, w1, b1, w2, b2):
    """Pure-f32 reference matching the PyTorch module's forward exactly."""
    h = x @ w1 + b1
    h = jnp.where(h > 0, h, 0.2 * h)
    return h @ w2 + b2


def reference_forward_bf16(x, w1b, b1, w2b, b2):
    """Same-math (bf16 matmul, f32 accum) reference for a tight comparison."""
    h = jnp.dot(x.astype(jnp.bfloat16), w1b, preferred_element_type=jnp.float32) + b1
    h = jnp.maximum(h, 0.2 * h)
    return jnp.dot(h.astype(jnp.bfloat16), w2b, preferred_element_type=jnp.float32) + b2


if __name__ == "__main__":
    input_dim, inte_dim, out_dim = 237, 512, 237

    key = jax.random.PRNGKey(0)
    kx, kp = jax.random.split(key)
    (w1b, b1, w2b, b2), (w1, b1f, w2, b2f) = init_params(kp, input_dim, inte_dim, out_dim)

    # Primary small-shape check: single-block grid, no batch padding, no slicing.
    batch = 8
    x = jax.random.normal(kx, (batch, input_dim), jnp.float32)
    out = jax.block_until_ready(mlp_forward(x, w1b, b1, w2b, b2))
    assert out.shape == (batch, out_dim)

    # Tight check vs an identical bf16-matmul / f32-accum JAX reference.
    ref_t = reference_forward_bf16(x, w1b, b1, w2b, b2)
    assert jnp.allclose(out, ref_t, atol=1e-2, rtol=1e-2)
    # Loose check vs the pure-f32 PyTorch-equivalent forward (bf16 rounding only).
    ref_f = reference_forward_f32(x, b1f * 0 + (x @ w1 + b1f) * 0 + w1[0, 0] * 0 + 1.0, b1f, w2, b2f) if False else \
        reference_forward_f32(x, w1, b1f, w2, b2f)
    assert jnp.allclose(out, ref_f, atol=1e-1, rtol=1e-1)

    # Secondary check: exercises the multi-block (>=2 TC) grid and batch pad/slice path.
    x2 = jax.random.normal(jax.random.PRNGKey(1), (40, input_dim), jnp.float32)
    out2 = jax.block_until_ready(mlp_forward(x2, w1b, b1, w2b, b2))
    assert out2.shape == (40, out_dim)
    ref2 = reference_forward_bf16(x2, w1b, b1, w2b, b2)
    assert jnp.allclose(out2, ref2, atol=1e-2, rtol=1e-2)

    print("KERNEL_OK")
</pallas_src>

<mosaic_0001>
module attributes {stable_mosaic.version = 11 : i64} {
  func.func @_mlp_kernel(%arg0: i32, %arg1: memref<8x237xf32, #tpu.memory_space<vmem>>, %arg2: memref<237x512xbf16, #tpu.memory_space<vmem>>, %arg3: memref<1x512xf32, #tpu.memory_space<vmem>>, %arg4: memref<512x237xbf16, #tpu.memory_space<vmem>>, %arg5: memref<1x237xf32, #tpu.memory_space<vmem>>, %arg6: memref<8x237xf32, #tpu.memory_space<vmem>>) attributes {dimension_semantics = [#tpu.dimension_semantics<parallel>], iteration_bounds = array<i64: 1>, scalar_prefetch = 0 : i64, scratch_operands = 0 : i64, tpu.core_type = #tpu.core_type<tc>, window_params = [{transform_indices = @transform_0, window_bounds = array<i64: 8, 237>}, {pipeline_mode = #tpu.pipeline_mode<synchronous>, transform_indices = @transform_1, window_bounds = array<i64: 237, 512>}, {pipeline_mode = #tpu.pipeline_mode<synchronous>, transform_indices = @transform_2, window_bounds = array<i64: 1, 512>}, {pipeline_mode = #tpu.pipeline_mode<synchronous>, transform_indices = @transform_3, window_bounds = array<i64: 512, 237>}, {pipeline_mode = #tpu.pipeline_mode<synchronous>, transform_indices = @transform_4, window_bounds = array<i64: 1, 237>}, {transform_indices = @transform_5, window_bounds = array<i64: 8, 237>}]} {
    %c0 = arith.constant 0 : index
    %c0_0 = arith.constant 0 : index
    %0 = vector.load %arg1[%c0, %c0_0] : memref<8x237xf32, #tpu.memory_space<vmem>>, vector<8x237xf32>
    %1 = arith.truncf %0 : vector<8x237xf32> to vector<8x237xbf16>
    %c0_1 = arith.constant 0 : index
    %c0_2 = arith.constant 0 : index
    %2 = vector.load %arg2[%c0_1, %c0_2] : memref<237x512xbf16, #tpu.memory_space<vmem>>, vector<237x512xbf16>
    %cst = arith.constant dense<0.000000e+00> : vector<8x512xf32>
    %3 = tpu.matmul %1, %2, %cst {dimension_numbers = #tpu.dot_dimension_numbers<[1], [0], [0], [1], [0, 0, 1, 1], [], []>} : vector<8x237xbf16>, vector<237x512xbf16>, vector<8x512xf32> -> vector<8x512xf32>
    %c0_3 = arith.constant 0 : index
    %c0_4 = arith.constant 0 : index
    %4 = vector.load %arg3[%c0_3, %c0_4] : memref<1x512xf32, #tpu.memory_space<vmem>>, vector<1x512xf32>
    %5 = vector.broadcast %4 : vector<1x512xf32> to vector<8x512xf32>
    %6 = arith.addf %3, %5 : vector<8x512xf32>
    %cst_5 = arith.constant 2.000000e-01 : f32
    %7 = vector.broadcast %cst_5 : f32 to vector<8x512xf32>
    %8 = arith.mulf %7, %6 : vector<8x512xf32>
    %9 = arith.maximumf %6, %8 : vector<8x512xf32>
    %10 = arith.truncf %9 : vector<8x512xf32> to vector<8x512xbf16>
    %c0_6 = arith.constant 0 : index
    %c0_7 = arith.constant 0 : index
    %11 = vector.load %arg4[%c0_6, %c0_7] : memref<512x237xbf16, #tpu.memory_space<vmem>>, vector<512x237xbf16>
    %cst_8 = arith.constant dense<0.000000e+00> : vector<8x237xf32>
    %12 = tpu.matmul %10, %11, %cst_8 {dimension_numbers = #tpu.dot_dimension_numbers<[1], [0], [0], [1], [0, 0, 1, 1], [], []>} : vector<8x512xbf16>, vector<512x237xbf16>, vector<8x237xf32> -> vector<8x237xf32>
    %c0_9 = arith.constant 0 : index
    %c0_10 = arith.constant 0 : index
    %13 = vector.load %arg5[%c0_9, %c0_10] : memref<1x237xf32, #tpu.memory_space<vmem>>, vector<1x237xf32>
    %14 = vector.broadcast %13 : vector<1x237xf32> to vector<8x237xf32>
    %15 = arith.addf %12, %14 : vector<8x237xf32>
    %c0_11 = arith.constant 0 : index
    %c0_12 = arith.constant 0 : index
    %16 = vector.load %arg6[%c0_11, %c0_12] : memref<8x237xf32, #tpu.memory_space<vmem>>, vector<8x237xf32>
    tpu.vector_store %arg6[%c0_11, %c0_12], %15 {strides = array<i32>} : memref<8x237xf32, #tpu.memory_space<vmem>>, vector<8x237xf32>,
    return
  }
  func.func @transform_0(%arg0: i32) -> (i32, i32) {
    %c0_i32 = arith.constant 0 : i32
    %c0_i32_0 = arith.constant 0 : i32
    return %arg0, %c0_i32 : i32, i32
  }
  func.func @transform_1(%arg0: i32) -> (i32, i32) {
    %c0_i32 = arith.constant 0 : i32
    %c0_i32_0 = arith.constant 0 : i32
    %c0_i32_1 = arith.constant 0 : i32
    return %c0_i32, %c0_i32_0 : i32, i32
  }
  func.func @transform_2(%arg0: i32) -> (i32, i32) {
    %c0_i32 = arith.constant 0 : i32
    %c0_i32_0 = arith.constant 0 : i32
    %c0_i32_1 = arith.constant 0 : i32
    return %c0_i32, %c0_i32_0 : i32, i32
  }
  func.func @transform_3(%arg0: i32) -> (i32, i32) {
    %c0_i32 = arith.constant 0 : i32
    %c0_i32_0 = arith.constant 0 : i32
    %c0_i32_1 = arith.constant 0 : i32
    return %c0_i32, %c0_i32_0 : i32, i32
  }
  func.func @transform_4(%arg0: i32) -> (i32, i32) {
    %c0_i32 = arith.constant 0 : i32
    %c0_i32_0 = arith.constant 0 : i32
    %c0_i32_1 = arith.constant 0 : i32
    return %c0_i32, %c0_i32_0 : i32, i32
  }
  func.func @transform_5(%arg0: i32) -> (i32, i32) {
    %c0_i32 = arith.constant 0 : i32
    %c0_i32_0 = arith.constant 0 : i32
    return %arg0, %c0_i32 : i32, i32
  }
}

</mosaic_0001>

<llo_original>
// kernel: mlp_forward.1
$region0: #{mlp_forward.1}
  #allocation0 [shape = 'u32[]', space=smem, size = 0x4, offset = 0x4, fixed_abs, tag = 'smem constant byte address 0x4 - core index']
  #allocation1 [shape = 'u32[144,128]{1,0:T(1,128)}', space=vmem, size = 0x12000, scoped, tag = 'internal scratch']
  %s0 = inlined_call_operand.vmem [shape: f32[8,237], index: 0, kind: input, shape index: {}]
  %s1 = inlined_call_operand.vmem [shape: bf16[237,512], index: 1, kind: input, shape index: {}]
  %s2 = inlined_call_operand.vmem [shape: f32[1,512], index: 2, kind: input, shape index: {}]
  %s3 = inlined_call_operand.vmem [shape: bf16[512,237], index: 3, kind: input, shape index: {}]
  %s4 = inlined_call_operand.vmem [shape: f32[1,237], index: 4, kind: input, shape index: {}]
  %s5 = inlined_call_operand.hbm [shape: f32[8,237], index: 5, kind: output, shape index: {}]
  %s6 = sld [smem:[#allocation0]]
  $region30: #{mlp_forward.1} parent=0
    _
  %s8 = ssub.s32 1, %s6
  %s9 = scalar_select 0, %s8, %s6
  $region1: #{mlp_forward.1} parent=0
    #allocation2 [shape = 'u8[8192]{0}', space=vmem, size = 0x2000, scoped, tag = 'output window, operand 0, single buffered']
    #allocation3 [shape = 's32[1]{0}', space=sflag, size = 0x4, scoped, tag = 'scoped memory for mlp_forward.1']
    %10 = vsyncpa [#allocation3], 0
    // Predicated region
    $region2: #{mlp_forward.1} parent=1 // pred_check
      _
    $region3: #{mlp_forward.1} parent=1 // pred_check_branch
      %12 = sbr.rel (0) target = $region5
    $region4: #{mlp_forward.1} parent=1 // pred_region
      _
    $region5: #{mlp_forward.1} parent=1 // pred_fallthru
      _
    // Predicated region
    $region6: #{mlp_forward.1} parent=1 // pred_check
      _
    $region7: #{mlp_forward.1} parent=1 // pred_check_branch
      %14 = sbr.rel (0) target = $region9
    $region8: #{mlp_forward.1} parent=1 // pred_region
      _
    $region9: #{mlp_forward.1} parent=1 // pred_fallthru
      _
    // Predicated region
    $region10: #{mlp_forward.1} parent=1 // pred_check
      _
    $region11: #{mlp_forward.1} parent=1 // pred_check_branch
      %16 = sbr.rel (0) target = $region13
    $region12: #{mlp_forward.1} parent=1 // pred_region
      _
    $region13: #{mlp_forward.1} parent=1 // pred_fallthru
      _
    // Predicated region
    $region14: #{mlp_forward.1} parent=1 // pred_check
      _
    $region15: #{mlp_forward.1} parent=1 // pred_check_branch
      %18 = sbr.rel (0) target = $region17
    $region16: #{mlp_forward.1} parent=1 // pred_region
      _
    $region17: #{mlp_forward.1} parent=1 // pred_fallthru
      _
    // Predicated region
    $region18: #{mlp_forward.1} parent=1 // pred_check
      _
    $region19: #{mlp_forward.1} parent=1 // pred_check_branch
      %20 = sbr.rel (0) target = $region21
    $region20: #{mlp_forward.1} parent=1 // pred_region
      _
    $region21: #{mlp_forward.1} parent=1 // pred_fallthru
      _
    %v22 = vld [vmem:[%s0] sm:$0xff]
    %v23 = vld [vmem:[%s0 + $0x8] sm:$0xff]
    %v24 = vpack.c.bf16 %v22, %v22
    %v25 = vpack.c.bf16 %v23, %v23
    %v26 = vld [vmem:[%s1] sm:$0xff]
    %v27 = vld [vmem:[%s1 + $0x8] sm:$0xff]
    %v28 = vld [vmem:[%s1 + $0x10] sm:$0xff]
    %v29 = vld [vmem:[%s1 + $0x18] sm:$0xff]
    %v30 = vld [vmem:[%s1 + $0x20] sm:$0xff]
    %v31 = vld [vmem:[%s1 + $0x28] sm:$0xff]
    %v32 = vld [vmem:[%s1 + $0x30] sm:$0xff]
    %v33 = vld [vmem:[%s1 + $0x38] sm:$0xff]
    %v34 = vld [vmem:[%s1 + $0x40] sm:$0xff]
    %v35 = vld [vmem:[%s1 + $0x48] sm:$0xff]
    %v36 = vld [vmem:[%s1 + $0x50] sm:$0xff]
    %v37 = vld [vmem:[%s1 + $0x58] sm:$0xff]
    %v38 = vld [vmem:[%s1 + $0x60] sm:$0xff]
    %v39 = vld [vmem:[%s1 + $0x68] sm:$0xff]
    %v40 = vld [vmem:[%s1 + $0x70] sm:$0xff]
    %v41 = vld [vmem:[%s1 + $0x78] sm:$0xff]
    %v42 = vld [vmem:[%s1 + $0x80] sm:$0xff]
    %v43 = vld [vmem:[%s1 + $0x88] sm:$0xff]
    %v44 = vld [vmem:[%s1 + $0x90] sm:$0xff]
    %v45 = vld [vmem:[%s1 + $0x98] sm:$0xff]
    %v46 = vld [vmem:[%s1 + $0xa0] sm:$0xff]
    %v47 = vld [vmem:[%s1 + $0xa8] sm:$0xff]
    %v48 = vld [vmem:[%s1 + $0xb0] sm:$0xff]
    %v49 = vld [vmem:[%s1 + $0xb8] sm:$0xff]
    %v50 = vld [vmem:[%s1 + $0xc0] sm:$0xff]
    %v51 = vld [vmem:[%s1 + $0xc8] sm:$0xff]
    %v52 = vld [vmem:[%s1 + $0xd0] sm:$0xff]
    %v53 = vld [vmem:[%s1 + $0xd8] sm:$0xff]
    %v54 = vld [vmem:[%s1 + $0xe0] sm:$0xff]
    %v55 = vld [vmem:[%s1 + $0xe8] sm:$0xff]
    %v56 = vld [vmem:[%s1 + $0xf0] sm:$0xff]
    %v57 = vld [vmem:[%s1 + $0xf8] sm:$0xff]
    %v58 = vld [vmem:[%s1 + $0x100] sm:$0xff]
    %v59 = vld [vmem:[%s1 + $0x108] sm:$0xff]
    %v60 = vld [vmem:[%s1 + $0x110] sm:$0xff]
    %v61 = vld [vmem:[%s1 + $0x118] sm:$0xff]
    %v62 = vld [vmem:[%s1 + $0x120] sm:$0xff]
    %v63 = vld [vmem:[%s1 + $0x128] sm:$0xff]
    %v64 = vld [vmem:[%s1 + $0x130] sm:$0xff]
    %v65 = vld [vmem:[%s1 + $0x138] sm:$0xff]
    %v66 = vld [vmem:[%s1 + $0x140] sm:$0xff]
    %v67 = vld [vmem:[%s1 + $0x148] sm:$0xff]
    %v68 = vld [vmem:[%s1 + $0x150] sm:$0xff]
    %v69 = vld [vmem:[%s1 + $0x158] sm:$0xff]
    %v70 = vld [vmem:[%s1 + $0x160] sm:$0xff]
    %v71 = vld [vmem:[%s1 + $0x168] sm:$0xff]
    %v72 = vld [vmem:[%s1 + $0x170] sm:$0xff]
    %v73 = vld [vmem:[%s1 + $0x178] sm:$0xff]
    %v74 = vld [vmem:[%s1 + $0x180] sm:$0xff]
    %v75 = vld [vmem:[%s1 + $0x188] sm:$0xff]
    %v76 = vld [vmem:[%s1 + $0x190] sm:$0xff]
    %v77 = vld [vmem:[%s1 + $0x198] sm:$0xff]
    %v78 = vld [vmem:[%s1 + $0x1a0] sm:$0xff]
    %v79 = vld [vmem:[%s1 + $0x1a8] sm:$0xff]
    %v80 = vld [vmem:[%s1 + $0x1b0] sm:$0xff]
    %v81 = vld [vmem:[%s1 + $0x1b8] sm:$0xff]
    %v82 = vld [vmem:[%s1 + $0x1c0] sm:$0xff]
    %v83 = vld [vmem:[%s1 + $0x1c8] sm:$0xff]
    %v84 = vld [vmem:[%s1 + $0x1d0] sm:$0x77]
    %v85 = vld [vmem:[%s1 + $0x1d8] sm:$0x77]
    %v86 = vld [vmem:[%s2] sm:$0xf]
    %v88 = vlaneseq
    %v89 = vshrl.u32 %v88, 7
    %v90 = vsub.s32 0, %v89
    %v91 = vrot.slane %v86, %v90
    %v92 = vlaneseq
    %v93 = vshrl.u32 %v92, 7
    %v94 = vsub.s32 1, %v93
    %v95 = vrot.slane %v86, %v94
    %v96 = vlaneseq
    %v97 = vshrl.u32 %v96, 7
    %v98 = vsub.s32 2, %v97
    %v99 = vrot.slane %v86, %v98
    %v100 = vlaneseq
    %v101 = vshrl.u32 %v100, 7
    %v102 = vsub.s32 3, %v101
    %v103 = vrot.slane %v86, %v102
    %v168 = vunpack.c.l.b16 %v26
    %v169 = vunpack.c.h.b16 %v26
    %v170 = vunpack.c.l.b16 %v27
    %v171 = vunpack.c.h.b16 %v27
    %v172 = vunpack.c.l.b16 %v28
    %v173 = vunpack.c.h.b16 %v28
    %v174 = vunpack.c.l.b16 %v29
    %v175 = vunpack.c.h.b16 %v29
    %v176 = vunpack.c.l.b16 %v30
    %v177 = vunpack.c.h.b16 %v30
    %v178 = vunpack.c.l.b16 %v31
    %v179 = vunpack.c.h.b16 %v31
    %v180 = vunpack.c.l.b16 %v32
    %v181 = vunpack.c.h.b16 %v32
    %v182 = vunpack.c.l.b16 %v33
    %v183 = vunpack.c.h.b16 %v33
    %v184 = vunpack.c.l.b16 %v34
    %v185 = vunpack.c.h.b16 %v34
    %v186 = vunpack.c.l.b16 %v35
    %v187 = vunpack.c.h.b16 %v35
    %v188 = vunpack.c.l.b16 %v36
    %v189 = vunpack.c.h.b16 %v36
    %v190 = vunpack.c.l.b16 %v37
    %v191 = vunpack.c.h.b16 %v37
    %v192 = vunpack.c.l.b16 %v38
    %v193 = vunpack.c.h.b16 %v38
    %v194 = vunpack.c.l.b16 %v39
    %v195 = vunpack.c.h.b16 %v39
    %v196 = vunpack.c.l.b16 %v40
    %v197 = vunpack.c.h.b16 %v40
    %v198 = vunpack.c.l.b16 %v41
    %v199 = vunpack.c.h.b16 %v41
    %v200 = vunpack.c.l.b16 %v42
    %v201 = vunpack.c.h.b16 %v42
    %v202 = vunpack.c.l.b16 %v43
    %v203 = vunpack.c.h.b16 %v43
    %v204 = vunpack.c.l.b16 %v44
    %v205 = vunpack.c.h.b16 %v44
    %v206 = vunpack.c.l.b16 %v45
    %v207 = vunpack.c.h.b16 %v45
    %v208 = vunpack.c.l.b16 %v46
    %v209 = vunpack.c.h.b16 %v46
    %v210 = vunpack.c.l.b16 %v47
    %v211 = vunpack.c.h.b16 %v47
    %v212 = vunpack.c.l.b16 %v48
    %v213 = vunpack.c.h.b16 %v48
    %v214 = vunpack.c.l.b16 %v49
    %v215 = vunpack.c.h.b16 %v49
    %v216 = vunpack.c.l.b16 %v50
    %v217 = vunpack.c.h.b16 %v50
    %v218 = vunpack.c.l.b16 %v51
    %v219 = vunpack.c.h.b16 %v51
    %v220 = vunpack.c.l.b16 %v52
    %v221 = vunpack.c.h.b16 %v52
    %v222 = vunpack.c.l.b16 %v53
    %v223 = vunpack.c.h.b16 %v53
    %v224 = vunpack.c.l.b16 %v54
    %v225 = vunpack.c.h.b16 %v54
    %v226 = vunpack.c.l.b16 %v55
    %v227 = vunpack.c.h.b16 %v55
    %v228 = vunpack.c.l.b16 %v56
    %v229 = vunpack.c.h.b16 %v56
    %v230 = vunpack.c.l.b16 %v57
    %v231 = vunpack.c.h.b16 %v57
    %v232 = vunpack.c.l.b16 %v58
    %v233 = vunpack.c.h.b16 %v58
    %v234 = vunpack.c.l.b16 %v59
    %v235 = vunpack.c.h.b16 %v59
    %v236 = vunpack.c.l.b16 %v60
    %v237 = vunpack.c.h.b16 %v60
    %v238 = vunpack.c.l.b16 %v61
    %v239 = vunpack.c.h.b16 %v61
    %v240 = vunpack.c.l.b16 %v62
    %v241 = vunpack.c.h.b16 %v62
    %v242 = vunpack.c.l.b16 %v63
    %v243 = vunpack.c.h.b16 %v63
    %v244 = vunpack.c.l.b16 %v64
    %v245 = vunpack.c.h.b16 %v64
    %v246 = vunpack.c.l.b16 %v65
    %v247 = vunpack.c.h.b16 %v65
    %v248 = vunpack.c.l.b16 %v66
    %v249 = vunpack.c.h.b16 %v66
    %v250 = vunpack.c.l.b16 %v67
    %v251 = vunpack.c.h.b16 %v67
    %v252 = vunpack.c.l.b16 %v68
    %v253 = vunpack.c.h.b16 %v68
    %v254 = vunpack.c.l.b16 %v69
    %v255 = vunpack.c.h.b16 %v69
    %v256 = vunpack.c.l.b16 %v70
    %v257 = vunpack.c.h.b16 %v70
    %v258 = vunpack.c.l.b16 %v71
    %v259 = vunpack.c.h.b16 %v71
    %v260 = vunpack.c.l.b16 %v72
    %v261 = vunpack.c.h.b16 %v72
    %v262 = vunpack.c.l.b16 %v73
    %v263 = vunpack.c.h.b16 %v73
    %v264 = vunpack.c.l.b16 %v74
    %v265 = vunpack.c.h.b16 %v74
    %v266 = vunpack.c.l.b16 %v75
    %v267 = vunpack.c.h.b16 %v75
    %v268 = vunpack.c.l.b16 %v76
    %v269 = vunpack.c.h.b16 %v76
    %v270 = vunpack.c.l.b16 %v77
    %v271 = vunpack.c.h.b16 %v77
    %v272 = vunpack.c.l.b16 %v78
    %v273 = vunpack.c.h.b16 %v78
    %v274 = vunpack.c.l.b16 %v79
    %v275 = vunpack.c.h.b16 %v79
    %v276 = vunpack.c.l.b16 %v80
    %v277 = vunpack.c.h.b16 %v80
    %v278 = vunpack.c.l.b16 %v81
    %v279 = vunpack.c.h.b16 %v81
    %v280 = vunpack.c.l.b16 %v82
    %v281 = vunpack.c.h.b16 %v82
    %v282 = vunpack.c.l.b16 %v83
    %v283 = vunpack.c.h.b16 %v83
    %v284 = vunpack.c.l.b16 %v84
    %v285 = vunpack.c.h.b16 %v84
    %v286 = vunpack.c.l.b16 %v85
    %v287 = vunpack.c.h.b16 %v85
    %v288 = vpack.c.b16 %v172, %v168
    %v289 = vpack.c.b16 %v173, %v169
    %v290 = vpack.c.b16 %v174, %v170
    %v291 = vpack.c.b16 %v175, %v171
    %v292 = vpack.c.b16 %v180, %v176
    %v293 = vpack.c.b16 %v181, %v177
    %v294 = vpack.c.b16 %v182, %v178
    %v295 = vpack.c.b16 %v183, %v179
    %v296 = vpack.c.b16 %v188, %v184
    %v297 = vpack.c.b16 %v189, %v185
    %v298 = vpack.c.b16 %v190, %v186
    %v299 = vpack.c.b16 %v191, %v187
    %v300 = vpack.c.b16 %v196, %v192
    %v301 = vpack.c.b16 %v197, %v193
    %v302 = vpack.c.b16 %v198, %v194
    %v303 = vpack.c.b16 %v199, %v195
    %v304 = vpack.c.b16 %v204, %v200
    %v305 = vpack.c.b16 %v205, %v201
    %v306 = vpack.c.b16 %v206, %v202
    %v307 = vpack.c.b16 %v207, %v203
    %v308 = vpack.c.b16 %v212, %v208
    %v309 = vpack.c.b16 %v213, %v209
    %v310 = vpack.c.b16 %v214, %v210
    %v311 = vpack.c.b16 %v215, %v211
    %v312 = vpack.c.b16 %v220, %v216
    %v313 = vpack.c.b16 %v221, %v217
    %v314 = vpack.c.b16 %v222, %v218
    %v315 = vpack.c.b16 %v223, %v219
    %v316 = vpack.c.b16 %v228, %v224
    %v317 = vpack.c.b16 %v229, %v225
    %v318 = vpack.c.b16 %v230, %v226
    %v319 = vpack.c.b16 %v231, %v227
    %v320 = vpack.c.b16 %v236, %v232
    %v321 = vpack.c.b16 %v237, %v233
    %v322 = vpack.c.b16 %v238, %v234
    %v323 = vpack.c.b16 %v239, %v235
    %v324 = vpack.c.b16 %v244, %v240
    %v325 = vpack.c.b16 %v245, %v241
    %v326 = vpack.c.b16 %v246, %v242
    %v327 = vpack.c.b16 %v247, %v243
    %v328 = vpack.c.b16 %v252, %v248
    %v329 = vpack.c.b16 %v253, %v249
    %v330 = vpack.c.b16 %v254, %v250
    %v331 = vpack.c.b16 %v255, %v251
    %v332 = vpack.c.b16 %v260, %v256
    %v333 = vpack.c.b16 %v261, %v257
    %v334 = vpack.c.b16 %v262, %v258
    %v335 = vpack.c.b16 %v263, %v259
    %v336 = vpack.c.b16 %v268, %v264
    %v337 = vpack.c.b16 %v269, %v265
    %v338 = vpack.c.b16 %v270, %v266
    %v339 = vpack.c.b16 %v271, %v267
    %v340 = vpack.c.b16 %v276, %v272
    %v341 = vpack.c.b16 %v277, %v273
    %v342 = vpack.c.b16 %v278, %v274
    %v343 = vpack.c.b16 %v279, %v275
    %v344 = vpack.c.b16 %v284, %v280
    %v345 = vpack.c.b16 %v285, %v281
    %v346 = vpack.c.b16 %v286, %v282
    %v347 = vpack.c.b16 %v287, %v283
    %vm404 = vcmask 891904
    %v406 = vsel %vm404, %v25, 0
    %vm408 = vcmask 1045504
    %vm409 = vcmask 1046528
    %v410 = vsel %vm408, 4294967295, 65535
    %v411 = vsel %vm409, %v410, 0
    %v413 = vand.u32 %v344, %v411
    %v416 = vand.u32 %v345, %v411
    %v419 = vand.u32 %v346, %v411
    %v422 = vand.u32 %v347, %v411
    %424 = vmatprep.subr.bf16.mxu0 %v289
    %425 = vmatpush1.bf16.msra.mxu0 %v288
    %426 = vmatprep.subr.bf16.mxu0 %v293
    %427 = vmatpush1.bf16.msra.mxu0 %v292
    %428 = vmatprep.subr.bf16.mxu0 %v297
    %429 = vmatpush1.bf16.msra.mxu0 %v296
    %430 = vmatprep.subr.bf16.mxu0 %v301
    %431 = vmatpush1.bf16.msra.mxu0 %v300
    %432 = vmatprep.subr.bf16.mxu0 %v305
    %433 = vmatpush1.bf16.msra.mxu0 %v304
    %434 = vmatprep.subr.bf16.mxu0 %v309
    %435 = vmatpush1.bf16.msra.mxu0 %v308
    %436 = vmatprep.subr.bf16.mxu0 %v313
    %437 = vmatpush1.bf16.msra.mxu0 %v312
    %438 = vmatprep.subr.bf16.mxu0 %v317
    %439 = vmatpush1.bf16.msra.mxu0 %v316
    %440 = vmatprep.subr.bf16.mxu0 %v321
    %441 = vmatpush1.bf16.msra.mxu0 %v320
    %442 = vmatprep.subr.bf16.mxu0 %v325
    %443 = vmatpush1.bf16.msra.mxu0 %v324
    %444 = vmatprep.subr.bf16.mxu0 %v329
    %445 = vmatpush1.bf16.msra.mxu0 %v328
    %446 = vmatprep.subr.bf16.mxu0 %v333
    %447 = vmatpush1.bf16.msra.mxu0 %v332
    %448 = vmatprep.subr.bf16.mxu0 %v337
    %449 = vmatpush1.bf16.msra.mxu0 %v336
    %450 = vmatprep.subr.bf16.mxu0 %v341
    %451 = vmatpush1.bf16.msra.mxu0 %v340
    %452 = vmatprep.subr.bf16.mxu0 %v416
    %453 = vmatpush1.bf16.msra.mxu0 %v413
    %454 = vmatprep.subr.bf16.mxu0 0
    %455 = vmatpush1.bf16.msra.mxu0 0
    %456 = vmatprep.mubr.bf16.mxu0 %v406
    %457 = vmatmul.mubr.bf16.gmra.mrb[0].mxu0 %v24
    %v458 = vpop.f32.mrb[0].mxu0
    %v459 = vadd.f32 %v91, %v458
    %v460 = vpop.f32.mrb[0].mxu0
    %v461 = vadd.f32 %v95, %v460
    %v462 = vpop.f32.mrb[0].mxu0
    %v463 = vpop.f32.mrb[0].mxu0
    %464 = vdwg.mxu0
    %465 = vmatprep.subr.bf16.mxu0 %v291
    %466 = vmatpush1.bf16.msra.mxu0 %v290
    %467 = vmatprep.subr.bf16.mxu0 %v295
    %468 = vmatpush1.bf16.msra.mxu0 %v294
    %469 = vmatprep.subr.bf16.mxu0 %v299
    %470 = vmatpush1.bf16.msra.mxu0 %v298
    %471 = vmatprep.subr.bf16.mxu0 %v303
    %472 = vmatpush1.bf16.msra.mxu0 %v302
    %473 = vmatprep.subr.bf16.mxu0 %v307
    %474 = vmatpush1.bf16.msra.mxu0 %v306
    %475 = vmatprep.subr.bf16.mxu0 %v311
    %476 = vmatpush1.bf16.msra.mxu0 %v310
    %477 = vmatprep.subr.bf16.mxu0 %v315
    %478 = vmatpush1.bf16.msra.mxu0 %v314
    %479 = vmatprep.subr.bf16.mxu0 %v319
    %480 = vmatpush1.bf16.msra.mxu0 %v318
    %481 = vmatprep.subr.bf16.mxu0 %v323
    %482 = vmatpush1.bf16.msra.mxu0 %v322
    %483 = vmatprep.subr.bf16.mxu0 %v327
    %484 = vmatpush1.bf16.msra.mxu0 %v326
    %485 = vmatprep.subr.bf16.mxu0 %v331
    %486 = vmatpush1.bf16.msra.mxu0 %v330
    %487 = vmatprep.subr.bf16.mxu0 %v335
    %488 = vmatpush1.bf16.msra.mxu0 %v334
    %489 = vmatprep.subr.bf16.mxu0 %v339
    %490 = vmatpush1.bf16.msra.mxu0 %v338
    %491 = vmatprep.subr.bf16.mxu0 %v343
    %492 = vmatpush1.bf16.msra.mxu0 %v342
    %493 = vmatprep.subr.bf16.mxu0 %v422
    %494 = vmatpush1.bf16.msra.mxu0 %v419
    %495 = vmatprep.subr.bf16.mxu0 0
    %496 = vmatpush1.bf16.msra.mxu0 0
    %497 = vmatprep.mubr.bf16.mxu0 %v406
    %498 = vmatmul.mubr.bf16.gmra.mrb[0].mxu0 %v24
    %v499 = vpop.f32.mrb[0].mxu0
    %v500 = vadd.f32 %v99, %v499
    %v501 = vpop.f32.mrb[0].mxu0
    %v502 = vadd.f32 %v103, %v501
    %v503 = vpop.f32.mrb[0].mxu0
    %v504 = vpop.f32.mrb[0].mxu0
    %505 = vdwg.mxu0
    %v506 = vmul.f32 %v459, 0.2
    %v507 = vmul.f32 %v461, 0.2
    %v508 = vmul.f32 %v500, 0.2
    %v509 = vmul.f32 %v502, 0.2
    %v510 = vmax.f32 %v459, %v506
    %v511 = vmax.f32 %v461, %v507
    %v512 = vmax.f32 %v500, %v508
    %v513 = vmax.f32 %v502, %v509
    %v514 = vpack.c.bf16 %v510, %v510
    %v515 = vpack.c.bf16 %v511, %v511
    %v516 = vpack.c.bf16 %v512, %v512
    %v517 = vpack.c.bf16 %v513, %v513
    %v518 = vld [vmem:[%s3] sm:$0xff]
    %v519 = vld [vmem:[%s3 + $0x8] sm:$0xff]
    %v520 = vld [vmem:[%s3 + $0x10] sm:$0xff]
    %v521 = vld [vmem:[%s3 + $0x18] sm:$0xff]
    %v522 = vld [vmem:[%s3 + $0x20] sm:$0xff]
    %v523 = vld [vmem:[%s3 + $0x28] sm:$0xff]
    %v524 = vld [vmem:[%s3 + $0x30] sm:$0xff]
    %v525 = vld [vmem:[%s3 + $0x38] sm:$0xff]
    %v526 = vld [vmem:[%s3 + $0x40] sm:$0xff]
    %v527 = vld [vmem:[%s3 + $0x48] sm:$0xff]
    %v528 = vld [vmem:[%s3 + $0x50] sm:$0xff]
    %v529 = vld [vmem:[%s3 + $0x58] sm:$0xff]
    %v530 = vld [vmem:[%s3 + $0x60] sm:$0xff]
    %v531 = vld [vmem:[%s3 + $0x68] sm:$0xff]
    %v532 = vld [vmem:[%s3 + $0x70] sm:$0xff]
    %v533 = vld [vmem:[%s3 + $0x78] sm:$0xff]
    %v534 = vld [vmem:[%s3 + $0x80] sm:$0xff]
    %v535 = vld [vmem:[%s3 + $0x88] sm:$0xff]
    %v536 = vld [vmem:[%s3 + $0x90] sm:$0xff]
    %v537 = vld [vmem:[%s3 + $0x98] sm:$0xff]
    %v538 = vld [vmem:[%s3 + $0xa0] sm:$0xff]
    %v539 = vld [vmem:[%s3 + $0xa8] sm:$0xff]
    %v540 = vld [vmem:[%s3 + $0xb0] sm:$0xff]
    %v541 = vld [vmem:[%s3 + $0xb8] sm:$0xff]
    %v542 = vld [vmem:[%s3 + $0xc0] sm:$0xff]
    %v543 = vld [vmem:[%s3 + $0xc8] sm:$0xff]
    %v544 = vld [vmem:[%s3 + $0xd0] sm:$0xff]
    %v545 = vld [vmem:[%s3 + $0xd8] sm:$0xff]
    %v546 = vld [vmem:[%s3 + $0xe0] sm:$0xff]
    %v547 = vld [vmem:[%s3 + $0xe8] sm:$0xff]
    %v548 = vld [vmem:[%s3 + $0xf0] sm:$0xff]
    %v549 = vld [vmem:[%s3 + $0xf8] sm:$0xff]
    %v550 = vld [vmem:[%s3 + $0x100] sm:$0xff]
    %v551 = vld [vmem:[%s3 + $0x108] sm:$0xff]
    %v552 = vld [vmem:[%s3 + $0x110] sm:$0xff]
    %v553 = vld [vmem:[%s3 + $0x118] sm:$0xff]
    %v554 = vld [vmem:[%s3 + $0x120] sm:$0xff]
    %v555 = vld [vmem:[%s3 + $0x128] sm:$0xff]
    %v556 = vld [vmem:[%s3 + $0x130] sm:$0xff]
    %v557 = vld [vmem:[%s3 + $0x138] sm:$0xff]
    %v558 = vld [vmem:[%s3 + $0x140] sm:$0xff]
    %v559 = vld [vmem:[%s3 + $0x148] sm:$0xff]
    %v560 = vld [vmem:[%s3 + $0x150] sm:$0xff]
    %v561 = vld [vmem:[%s3 + $0x158] sm:$0xff]
    %v562 = vld [vmem:[%s3 + $0x160] sm:$0xff]
    %v563 = vld [vmem:[%s3 + $0x168] sm:$0xff]
    %v564 = vld [vmem:[%s3 + $0x170] sm:$0xff]
    %v565 = vld [vmem:[%s3 + $0x178] sm:$0xff]
    %v566 = vld [vmem:[%s3 + $0x180] sm:$0xff]
    %v567 = vld [vmem:[%s3 + $0x188] sm:$0xff]
    %v568 = vld [vmem:[%s3 + $0x190] sm:$0xff]
    %v569 = vld [vmem:[%s3 + $0x198] sm:$0xff]
    %v570 = vld [vmem:[%s3 + $0x1a0] sm:$0xff]
    %v571 = vld [vmem:[%s3 + $0x1a8] sm:$0xff]
    %v572 = vld [vmem:[%s3 + $0x1b0] sm:$0xff]
    %v573 = vld [vmem:[%s3 + $0x1b8] sm:$0xff]
    %v574 = vld [vmem:[%s3 + $0x1c0] sm:$0xff]
    %v575 = vld [vmem:[%s3 + $0x1c8] sm:$0xff]
    %v576 = vld [vmem:[%s3 + $0x1d0] sm:$0xff]
    %v577 = vld [vmem:[%s3 + $0x1d8] sm:$0xff]
    %v578 = vld [vmem:[%s3 + $0x1e0] sm:$0xff]
    %v579 = vld [vmem:[%s3 + $0x1e8] sm:$0xff]
    %v580 = vld [vmem:[%s3 + $0x1f0] sm:$0xff]
    %v581 = vld [vmem:[%s3 + $0x1f8] sm:$0xff]
    %v582 = vld [vmem:[%s4] sm:$0x3]
    %v584 = vlaneseq
    %v585 = vshrl.u32 %v584, 7
    %v586 = vsub.s32 0, %v585
    %v587 = vrot.slane %v582, %v586
    %v588 = vlaneseq
    %v589 = vshrl.u32 %v588, 7
    %v590 = vsub.s32 1, %v589
    %v591 = vrot.slane %v582, %v590
    %v658 = vunpack.c.l.b16 %v518
    %v659 = vunpack.c.h.b16 %v518
    %v660 = vunpack.c.l.b16 %v519
    %v661 = vunpack.c.h.b16 %v519
    %v662 = vunpack.c.l.b16 %v520
    %v663 = vunpack.c.h.b16 %v520
    %v664 = vunpack.c.l.b16 %v521
    %v665 = vunpack.c.h.b16 %v521
    %v666 = vunpack.c.l.b16 %v522
    %v667 = vunpack.c.h.b16 %v522
    %v668 = vunpack.c.l.b16 %v523
    %v669 = vunpack.c.h.b16 %v523
    %v670 = vunpack.c.l.b16 %v524
    %v671 = vunpack.c.h.b16 %v524
    %v672 = vunpack.c.l.b16 %v525
    %v673 = vunpack.c.h.b16 %v525
    %v674 = vunpack.c.l.b16 %v526
    %v675 = vunpack.c.h.b16 %v526
    %v676 = vunpack.c.l.b16 %v527
    %v677 = vunpack.c.h.b16 %v527
    %v678 = vunpack.c.l.b16 %v528
    %v679 = vunpack.c.h.b16 %v528
    %v680 = vunpack.c.l.b16 %v529
    %v681 = vunpack.c.h.b16 %v529
    %v682 = vunpack.c.l.b16 %v530
    %v683 = vunpack.c.h.b16 %v530
    %v684 = vunpack.c.l.b16 %v531
    %v685 = vunpack.c.h.b16 %v531
    %v686 = vunpack.c.l.b16 %v532
    %v687 = vunpack.c.h.b16 %v532
    %v688 = vunpack.c.l.b16 %v533
    %v689 = vunpack.c.h.b16 %v533
    %v690 = vunpack.c.l.b16 %v534
    %v691 = vunpack.c.h.b16 %v534
    %v692 = vunpack.c.l.b16 %v535
    %v693 = vunpack.c.h.b16 %v535
    %v694 = vunpack.c.l.b16 %v536
    %v695 = vunpack.c.h.b16 %v536
    %v696 = vunpack.c.l.b16 %v537
    %v697 = vunpack.c.h.b16 %v537
    %v698 = vunpack.c.l.b16 %v538
    %v699 = vunpack.c.h.b16 %v538
    %v700 = vunpack.c.l.b16 %v539
    %v701 = vunpack.c.h.b16 %v539
    %v702 = vunpack.c.l.b16 %v540
    %v703 = vunpack.c.h.b16 %v540
    %v704 = vunpack.c.l.b16 %v541
    %v705 = vunpack.c.h.b16 %v541
    %v706 = vunpack.c.l.b16 %v542
    %v707 = vunpack.c.h.b16 %v542
    %v708 = vunpack.c.l.b16 %v543
    %v709 = vunpack.c.h.b16 %v543
    %v710 = vunpack.c.l.b16 %v544
    %v711 = vunpack.c.h.b16 %v544
    %v712 = vunpack.c.l.b16 %v545
    %v713 = vunpack.c.h.b16 %v545
    %v714 = vunpack.c.l.b16 %v546
    %v715 = vunpack.c.h.b16 %v546
    %v716 = vunpack.c.l.b16 %v547
    %v717 = vunpack.c.h.b16 %v547
    %v718 = vunpack.c.l.b16 %v548
    %v719 = vunpack.c.h.b16 %v548
    %v720 = vunpack.c.l.b16 %v549
    %v721 = vunpack.c.h.b16 %v549
    %v722 = vunpack.c.l.b16 %v550
    %v723 = vunpack.c.h.b16 %v550
    %v724 = vunpack.c.l.b16 %v551
    %v725 = vunpack.c.h.b16 %v551
    %v726 = vunpack.c.l.b16 %v552
    %v727 = vunpack.c.h.b16 %v552
    %v728 = vunpack.c.l.b16 %v553
    %v729 = vunpack.c.h.b16 %v553
    %v730 = vunpack.c.l.b16 %v554
    %v731 = vunpack.c.h.b16 %v554
    %v732 = vunpack.c.l.b16 %v555
    %v733 = vunpack.c.h.b16 %v555
    %v734 = vunpack.c.l.b16 %v556
    %v735 = vunpack.c.h.b16 %v556
    %v736 = vunpack.c.l.b16 %v557
    %v737 = vunpack.c.h.b16 %v557
    %v738 = vunpack.c.l.b16 %v558
    %v739 = vunpack.c.h.b16 %v558
    %v740 = vunpack.c.l.b16 %v559
    %v741 = vunpack.c.h.b16 %v559
    %v742 = vunpack.c.l.b16 %v560
    %v743 = vunpack.c.h.b16 %v560
    %v744 = vunpack.c.l.b16 %v561
    %v745 = vunpack.c.h.b16 %v561
    %v746 = vunpack.c.l.b16 %v562
    %v747 = vunpack.c.h.b16 %v562
    %v748 = vunpack.c.l.b16 %v563
    %v749 = vunpack.c.h.b16 %v563
    %v750 = vunpack.c.l.b16 %v564
    %v751 = vunpack.c.h.b16 %v564
    %v752 = vunpack.c.l.b16 %v565
    %v753 = vunpack.c.h.b16 %v565
    %v754 = vunpack.c.l.b16 %v566
    %v755 = vunpack.c.h.b16 %v566
    %v756 = vunpack.c.l.b16 %v567
    %v757 = vunpack.c.h.b16 %v567
    %v758 = vunpack.c.l.b16 %v568
    %v759 = vunpack.c.h.b16 %v568
    %v760 = vunpack.c.l.b16 %v569
    %v761 = vunpack.c.h.b16 %v569
    %v762 = vunpack.c.l.b16 %v570
    %v763 = vunpack.c.h.b16 %v570
    %v764 = vunpack.c.l.b16 %v571
    %v765 = vunpack.c.h.b16 %v571
    %v766 = vunpack.c.l.b16 %v572
    %v767 = vunpack.c.h.b16 %v572
    %v768 = vunpack.c.l.b16 %v573
    %v769 = vunpack.c.h.b16 %v573
    %v770 = vunpack.c.l.b16 %v574
    %v771 = vunpack.c.h.b16 %v574
    %v772 = vunpack.c.l.b16 %v575
    %v773 = vunpack.c.h.b16 %v575
    %v774 = vunpack.c.l.b16 %v576
    %v775 = vunpack.c.h.b16 %v576
    %v776 = vunpack.c.l.b16 %v577
    %v777 = vunpack.c.h.b16 %v577
    %v778 = vunpack.c.l.b16 %v578
    %v779 = vunpack.c.h.b16 %v578
    %v780 = vunpack.c.l.b16 %v579
    %v781 = vunpack.c.h.b16 %v579
    %v782 = vunpack.c.l.b16 %v580
    %v783 = vunpack.c.h.b16 %v580
    %v784 = vunpack.c.l.b16 %v581
    %v785 = vunpack.c.h.b16 %v581
    %v786 = vpack.c.b16 %v660, %v658
    %v787 = vpack.c.b16 %v661, %v659
    %v788 = vpack.c.b16 %v664, %v662
    %v789 = vpack.c.b16 %v665, %v663
    %v790 = vpack.c.b16 %v668, %v666
    %v791 = vpack.c.b16 %v669, %v667
    %v792 = vpack.c.b16 %v672, %v670
    %v793 = vpack.c.b16 %v673, %v671
    %v794 = vpack.c.b16 %v676, %v674
    %v795 = vpack.c.b16 %v677, %v675
    %v796 = vpack.c.b16 %v680, %v678
    %v797 = vpack.c.b16 %v681, %v679
    %v798 = vpack.c.b16 %v684, %v682
    %v799 = vpack.c.b16 %v685, %v683
    %v800 = vpack.c.b16 %v688, %v686
    %v801 = vpack.c.b16 %v689, %v687
    %v802 = vpack.c.b16 %v692, %v690
    %v803 = vpack.c.b16 %v693, %v691
    %v804 = vpack.c.b16 %v696, %v694
    %v805 = vpack.c.b16 %v697, %v695
    %v806 = vpack.c.b16 %v700, %v698
    %v807 = vpack.c.b16 %v701, %v699
    %v808 = vpack.c.b16 %v704, %v702
    %v809 = vpack.c.b16 %v705, %v703
    %v810 = vpack.c.b16 %v708, %v706
    %v811 = vpack.c.b16 %v709, %v707
    %v812 = vpack.c.b16 %v712, %v710
    %v813 = vpack.c.b16 %v713, %v711
    %v814 = vpack.c.b16 %v716, %v714
    %v815 = vpack.c.b16 %v717, %v715
    %v816 = vpack.c.b16 %v720, %v718
    %v817 = vpack.c.b16 %v721, %v719
    %v818 = vpack.c.b16 %v724, %v722
    %v819 = vpack.c.b16 %v725, %v723
    %v820 = vpack.c.b16 %v728, %v726
    %v821 = vpack.c.b16 %v729, %v727
    %v822 = vpack.c.b16 %v732, %v730
    %v823 = vpack.c.b16 %v733, %v731
    %v824 = vpack.c.b16 %v736, %v734
    %v825 = vpack.c.b16 %v737, %v735
    %v826 = vpack.c.b16 %v740, %v738
    %v827 = vpack.c.b16 %v741, %v739
    %v828 = vpack.c.b16 %v744, %v742
    %v829 = vpack.c.b16 %v745, %v743
    %v830 = vpack.c.b16 %v748, %v746
    %v831 = vpack.c.b16 %v749, %v747
    %v832 = vpack.c.b16 %v752, %v750
    %v833 = vpack.c.b16 %v753, %v751
    %v834 = vpack.c.b16 %v756, %v754
    %v835 = vpack.c.b16 %v757, %v755
    %v836 = vpack.c.b16 %v760, %v758
    %v837 = vpack.c.b16 %v761, %v759
    %v838 = vpack.c.b16 %v764, %v762
    %v839 = vpack.c.b16 %v765, %v763
    %v840 = vpack.c.b16 %v768, %v766
    %v841 = vpack.c.b16 %v769, %v767
    %v842 = vpack.c.b16 %v772, %v770
    %v843 = vpack.c.b16 %v773, %v771
    %v844 = vpack.c.b16 %v776, %v774
    %v845 = vpack.c.b16 %v777, %v775
    %v846 = vpack.c.b16 %v780, %v778
    %v847 = vpack.c.b16 %v781, %v779
    %v848 = vpack.c.b16 %v784, %v782
    %v849 = vpack.c.b16 %v785, %v783
    %914 = vmatprep.subr.bf16.mxu0 %v787
    %915 = vmatpush1.bf16.msra.mxu0 %v786
    %916 = vmatprep.subr.bf16.mxu0 %v789
    %917 = vmatpush1.bf16.msra.mxu0 %v788
    %918 = vmatprep.subr.bf16.mxu0 %v791
    %919 = vmatpush1.bf16.msra.mxu0 %v790
    %920 = vmatprep.subr.bf16.mxu0 %v793
    %921 = vmatpush1.bf16.msra.mxu0 %v792
    %922 = vmatprep.subr.bf16.mxu0 %v795
    %923 = vmatpush1.bf16.msra.mxu0 %v794
    %924 = vmatprep.subr.bf16.mxu0 %v797
    %925 = vmatpush1.bf16.msra.mxu0 %v796
    %926 = vmatprep.subr.bf16.mxu0 %v799
    %927 = vmatpush1.bf16.msra.mxu0 %v798
    %928 = vmatprep.subr.bf16.mxu0 %v801
    %929 = vmatpush1.bf16.msra.mxu0 %v800
    %930 = vmatprep.subr.bf16.mxu0 %v803
    %931 = vmatpush1.bf16.msra.mxu0 %v802
    %932 = vmatprep.subr.bf16.mxu0 %v805
    %933 = vmatpush1.bf16.msra.mxu0 %v804
    %934 = vmatprep.subr.bf16.mxu0 %v807
    %935 = vmatpush1.bf16.msra.mxu0 %v806
    %936 = vmatprep.subr.bf16.mxu0 %v809
    %937 = vmatpush1.bf16.msra.mxu0 %v808
    %938 = vmatprep.subr.bf16.mxu0 %v811
    %939 = vmatpush1.bf16.msra.mxu0 %v810
    %940 = vmatprep.subr.bf16.mxu0 %v813
    %941 = vmatpush1.bf16.msra.mxu0 %v812
    %942 = vmatprep.subr.bf16.mxu0 %v815
    %943 = vmatpush1.bf16.msra.mxu0 %v814
    %944 = vmatprep.subr.bf16.mxu0 %v817
    %945 = vmatpush1.bf16.msra.mxu0 %v816
    %946 = vmatprep.mubr.bf16.mxu0 %v515
    %947 = vmatmul.mubr.bf16.gmra.mrb[0].mxu0 %v514
    %v948 = vpop.f32.mrb[0].mxu0
    %v949 = vadd.f32 %v587, %v948
    %v950 = vpop.f32.mrb[0].mxu0
    %v951 = vadd.f32 %v591, %v950
    %v952 = vpop.f32.mrb[0].mxu0
    %v953 = vpop.f32.mrb[0].mxu0
    %954 = vdwg.mxu0
    %955 = vmatprep.subr.bf16.mxu0 %v819
    %956 = vmatpush1.bf16.msra.mxu0 %v818
    %957 = vmatprep.subr.bf16.mxu0 %v821
    %958 = vmatpush1.bf16.msra.mxu0 %v820
    %959 = vmatprep.subr.bf16.mxu0 %v823
    %960 = vmatpush1.bf16.msra.mxu0 %v822
    %961 = vmatprep.subr.bf16.mxu0 %v825
    %962 = vmatpush1.bf16.msra.mxu0 %v824
    %963 = vmatprep.subr.bf16.mxu0 %v827
    %964 = vmatpush1.bf16.msra.mxu0 %v826
    %965 = vmatprep.subr.bf16.mxu0 %v829
    %966 = vmatpush1.bf16.msra.mxu0 %v828
    %967 = vmatprep.subr.bf16.mxu0 %v831
    %968 = vmatpush1.bf16.msra.mxu0 %v830
    %969 = vmatprep.subr.bf16.mxu0 %v833
    %970 = vmatpush1.bf16.msra.mxu0 %v832
    %971 = vmatprep.subr.bf16.mxu0 %v835
    %972 = vmatpush1.bf16.msra.mxu0 %v834
    %973 = vmatprep.subr.bf16.mxu0 %v837
    %974 = vmatpush1.bf16.msra.mxu0 %v836
    %975 = vmatprep.subr.bf16.mxu0 %v839
    %976 = vmatpush1.bf16.msra.mxu0 %v838
    %977 = vmatprep.subr.bf16.mxu0 %v841
    %978 = vmatpush1.bf16.msra.mxu0 %v840
    %979 = vmatprep.subr.bf16.mxu0 %v843
    %980 = vmatpush1.bf16.msra.mxu0 %v842
    %981 = vmatprep.subr.bf16.mxu0 %v845
    %982 = vmatpush1.bf16.msra.mxu0 %v844
    %983 = vmatprep.subr.bf16.mxu0 %v847
    %984 = vmatpush1.bf16.msra.mxu0 %v846
    %985 = vmatprep.subr.bf16.mxu0 %v849
    %986 = vmatpush1.bf16.msra.mxu0 %v848
    %987 = vmatprep.mubr.bf16.mxu0 %v517
    %988 = vmatmul.mubr.bf16.gmra.mrb[0].mxu0 %v516
    %v989 = vpop.f32.mrb[0].mxu0
    %v990 = vadd.f32 %v949, %v989
    %v991 = vpop.f32.mrb[0].mxu0
    %v992 = vadd.f32 %v951, %v991
    %v993 = vpop.f32.mrb[0].mxu0
    %v994 = vpop.f32.mrb[0].mxu0
    %995 = vdwg.mxu0
    %996 = vst [vmem:[#allocation2] sm:$0xff] %v990
    %997 = vst.msk [vmem:[#allocation2 + $0x8] sm:$0xff] %vm404, %v992
    // Predicated region
    $region22: #{mlp_forward.1} parent=1 // pred_check
      _
    $region23: #{mlp_forward.1} parent=1 // pred_check_branch
      %999 = sbr.rel (0) target = $region25
    $region24: #{mlp_forward.1} parent=1 // pred_region
      %s1001 = ssub.s32 256, 256
      %1002 = vsyncadd [#allocation3], %s1001
      %s1004 = sshll.u32 [#allocation2], 4
      %s1005 = int_to_ptr.vmem [resolvable:$true] %s1004
      %1007 = dma.vmem_to_hbm [thread:$0]  %s1005, 256, %s5, [#allocation3]
    $region25: #{mlp_forward.1} parent=1 // pred_fallthru
      _
    // Predicated region
    $region26: #{mlp_forward.1} parent=1 // pred_check
      _
    $region27: #{mlp_forward.1} parent=1 // pred_check_branch
      %1009 = sbr.rel (0) target = $region29
    $region28: #{mlp_forward.1} parent=1 // pred_region
      %1010 = dma.done [#allocation3], 256
    $region29: #{mlp_forward.1} parent=1 // pred_fallthru
      _
    %1011 = vsyncpa [#allocation3], 1

</llo_original>
